<compile_context>
chip_gen: v7x
topology: tpu7x:2x2x1
jax: 0.10.0
libtpu: 0.0.40
codegen_flags: <defaults>
</compile_context>

<pallas_src>
import functools

import jax
import jax.numpy as jnp
from jax.experimental import pallas as pl
from jax.experimental.pallas import tpu as pltpu

COMPUTE_DTYPE = jnp.bfloat16  # MXU operand dtype; accumulation stays f32


def _conv_kernel(x_ref, w_ref, b_ref, o_ref, *, tr, wo, cout):
    """One (image, row-block) step of the stride-2 3x3 conv.

    x_ref : (1, 1, 2, 3*Cin, (tr+1)*Wo)  halo'd row-phase, kw-folded input (bf16)
    w_ref : (3, Cout, 3*Cin)             per-kh folded weights (bf16), resident
    b_ref : (Cout, 1)                    f32 bias, resident
    o_ref : (1, Cout, tr*Wo)             NCHW-flat output block
    """
    m = tr * wo
    acc = jnp.zeros((cout, m), dtype=jnp.float32)
    for kh in range(3):
        u, dr = kh % 2, kh // 2          # row phase / halo row-pair offset
        start = dr * wo                  # static lane offset into the halo'd block
        tap = x_ref[0, 0, u, :, start:start + m]              # (3*Cin, m)
        acc += jnp.dot(w_ref[kh], tap, preferred_element_type=jnp.float32)
    acc += b_ref[...]                                          # f32 bias, lane-broadcast
    o_ref[0] = acc.astype(o_ref.dtype)


def _vmem_limit_bytes():
    """Generation-aware scoped-VMEM request (v7x: 64 MiB phys, v5e/v6e: 128 MiB)."""
    try:
        cap = int(pltpu.get_tpu_info().vmem_capacity_bytes)
    except Exception:
        cap = 64 * 1024 * 1024  # conservative default (v7x per-core physical VMEM)
    return max(16 * 1024 * 1024, min(cap * 3 // 4, 96 * 1024 * 1024))


def _pick_block_rows(ho, wo, kc, cout, out_itemsize, block_budget):
    """Largest output-row block (divisor of Ho, lane-tileable) fitting the budget."""
    in_item = jnp.dtype(COMPUTE_DTYPE).itemsize

    def fits(tr):
        in_blk = 2 * kc * (tr + 1) * wo * in_item       # halo'd bf16 input block
        out_blk = cout * tr * wo * out_itemsize
        acc = cout * tr * wo * 4                        # f32 accumulator
        return 2 * in_blk + 2 * out_blk + acc <= block_budget   # blocks double-buffered

    for tr in range(ho, 0, -1):
        if ho % tr:
            continue
        if tr != ho and (tr * wo) % 128:
            continue                     # keep the output lane axis (8,128)-tileable
        if fits(tr):
            return tr
    for tr in range(1, ho + 1):          # nothing fits the budget: smallest legal block
        if ho % tr == 0 and (tr == ho or (tr * wo) % 128 == 0):
            return tr
    return ho


@functools.partial(jax.jit, static_argnames=("block_rows",))
def downsample_forward(x_nchw, t, weight, bias, *, block_rows=None):
    """Pallas equivalent of DownSample.forward(x, t): t ignored, returns conv(x)."""
    del t                                                      # unused, as in the module
    N, C, H, W = x_nchw.shape
    Cout, Cin, KH, KW = weight.shape
    assert (Cin, KH, KW) == (C, 3, 3)
    assert H % 2 == 0 and W % 2 == 0, "even spatial dims expected"
    # TODO(synk): odd H/W (still valid for PyTorch's stride-2/pad-1 conv) unsupported.
    Ho, Wo = H // 2, W // 2
    HP2 = Ho + 1                                               # row pairs of the padded image
    KC = 3 * C                                                 # kw-folded contraction size
    out_dtype = x_nchw.dtype

    vmem_limit = _vmem_limit_bytes()
    w_bytes = 3 * Cout * KC * jnp.dtype(COMPUTE_DTYPE).itemsize
    block_budget = max(1 << 20, int(vmem_limit * 0.6) - 2 * w_bytes - (8 << 10))
    if block_rows is None:
        tr = _pick_block_rows(Ho, Wo, KC, Cout, jnp.dtype(out_dtype).itemsize,
                              block_budget)
    else:
        tr = int(block_rows)
        assert Ho % tr == 0 and (tr == Ho or (tr * Wo) % 128 == 0)
    n_rblk = Ho // tr

    # ---- wrapper relayout: stride-2 column taps folded onto the channel axis,
    # ---- rows split into even/odd phase, one halo row-pair duplicated per block.
    xp = jnp.pad(x_nchw, ((0, 0), (0, 0), (1, 1), (1, 1)))             # (N, C, H+2, W+2)
    cols = [xp[:, :, :, kw:kw + 2 * Wo:2] for kw in range(3)]           # 3 column taps
    xk = jnp.stack(cols, axis=1).reshape(N, KC, H + 2, Wo)              # kc = kw*C + ci
    xc = jnp.transpose(xk.reshape(N, KC, HP2, 2, Wo), (0, 3, 1, 2, 4))  # (N,2,KC,HP2,Wo)
    main = xc[:, :, :, :Ho, :].reshape(N, 2, KC, n_rblk, tr, Wo)
    halo = xc[:, :, :, tr::tr, :]                                       # (N,2,KC,n_rblk,Wo)
    xb = jnp.concatenate([main, halo[:, :, :, :, None, :]], axis=4)
    xb = jnp.transpose(xb, (0, 3, 1, 2, 4, 5))                          # (N,n_rblk,2,KC,tr+1,Wo)
    xb = xb.reshape(N, n_rblk, 2, KC, (tr + 1) * Wo).astype(COMPUTE_DTYPE)

    # per-kh (Cout, 3*Cin) weights (kc = kw*C + ci); bias stays f32
    w_mat = jnp.transpose(weight, (2, 0, 3, 1)).reshape(3, Cout, KC).astype(COMPUTE_DTYPE)
    b_mat = bias.reshape(Cout, 1).astype(jnp.float32)

    kernel = functools.partial(_conv_kernel, tr=tr, wo=Wo, cout=Cout)
    flops = 2 * N * Ho * Wo * 9 * C * Cout
    bytes_accessed = int(xb.size * xb.dtype.itemsize
                         + w_mat.size * w_mat.dtype.itemsize
                         + b_mat.size * 4
                         + N * Cout * Ho * Wo * jnp.dtype(out_dtype).itemsize)

    out_flat = pl.pallas_call(
        kernel,
        out_shape=jax.ShapeDtypeStruct((N, Cout, Ho * Wo), out_dtype),
        grid=(N, n_rblk),
        in_specs=[
            pl.BlockSpec((1, 1, 2, KC, (tr + 1) * Wo), lambda n, q: (n, q, 0, 0, 0)),
            pl.BlockSpec((3, Cout, KC), lambda n, q: (0, 0, 0)),
            pl.BlockSpec((Cout, 1), lambda n, q: (0, 0)),
        ],
        out_specs=pl.BlockSpec((1, Cout, tr * Wo), lambda n, q: (n, 0, q)),
        compiler_params=pltpu.CompilerParams(
            dimension_semantics=("parallel", "parallel"),
            vmem_limit_bytes=int(vmem_limit)),
        cost_estimate=pl.CostEstimate(
            flops=flops, transcendentals=0, bytes_accessed=bytes_accessed),
    )(xb, w_mat, b_mat)

    # Output is already NCHW-flat: no epilogue transpose.
    # TODO(synk): for peak load/store rate Wo (or tr*Wo) should be a multiple of 128
    # (lane-dense stores and an aligned kh=2 tap slice); small channel counts
    # (C << 128) leave most MXU columns idle regardless of layout choice.
    return out_flat.reshape(N, Cout, Ho, Wo)


def _ref_conv(x, w, b):
    y = jax.lax.conv_general_dilated(
        x, w, window_strides=(2, 2), padding=((1, 1), (1, 1)),
        dimension_numbers=("NCHW", "OIHW", "NCHW"),
        precision=jax.lax.Precision.HIGHEST)
    return y + b[None, :, None, None]


if __name__ == "__main__":
    root = jax.random.PRNGKey(0)

    def run_case(n, c, h, w, block_rows=None):
        k_x, k_w, k_b, k_t = jax.random.split(jax.random.fold_in(root, h * 131 + c), 4)
        x = jax.random.normal(k_x, (n, c, h, w), dtype=jnp.float32)
        t = jax.random.normal(k_t, (n, 32), dtype=jnp.float32)

        fan_in = c * 3 * 3
        bound = 1.0 / (fan_in ** 0.5)
        weight = jax.random.uniform(k_w, (c, c, 3, 3), jnp.float32, -bound, bound)
        bias = jax.random.uniform(k_b, (c,), jnp.float32, -bound, bound)

        y = downsample_forward(x, t, weight, bias, block_rows=block_rows)
        y = jax.block_until_ready(y)
        assert y.shape == (n, c, h // 2, w // 2), y.shape

        # Reference 1 (tight): conv on identically bf16-rounded operands, f32 math.
        xq = x.astype(jnp.bfloat16).astype(jnp.float32)
        wq = weight.astype(jnp.bfloat16).astype(jnp.float32)
        y_ref = _ref_conv(xq, wq, bias)
        assert jnp.allclose(y, y_ref, atol=2e-3, rtol=2e-3), \
            float(jnp.max(jnp.abs(y - y_ref)))

        # Reference 2 (loose): full-f32 conv; difference is bf16 operand rounding only.
        y_f32 = _ref_conv(x, weight, bias)
        assert jnp.allclose(y, y_f32, atol=5e-2, rtol=5e-2), \
            float(jnp.max(jnp.abs(y - y_f32)))

    # Module-consistent small shape (single row block per image).
    run_case(2, 4, 16, 16)
    # Multi-row-block path: exercises halo duplication + lane-dense (tr*Wo=128) stores.
    run_case(2, 4, 32, 32, block_rows=8)

    print("KERNEL_OK")
</pallas_src>

<mosaic_0001>
module attributes {stable_mosaic.version = 11 : i64} {
  func.func @_conv_kernel(%arg0: i32, %arg1: i32, %arg2: memref<1x1x2x12x72xbf16, #tpu.memory_space<vmem>>, %arg3: memref<3x4x12xbf16, #tpu.memory_space<vmem>>, %arg4: memref<4x1xf32, #tpu.memory_space<vmem>>, %arg5: memref<1x4x64xf32, #tpu.memory_space<vmem>>) attributes {dimension_semantics = [#tpu.dimension_semantics<parallel>, #tpu.dimension_semantics<parallel>], iteration_bounds = array<i64: 2, 1>, scalar_prefetch = 0 : i64, scratch_operands = 0 : i64, tpu.core_type = #tpu.core_type<tc>, window_params = [{transform_indices = @transform_0, window_bounds = array<i64: 1, 1, 2, 12, 72>}, {pipeline_mode = #tpu.pipeline_mode<synchronous>, transform_indices = @transform_1, window_bounds = array<i64: 3, 4, 12>}, {pipeline_mode = #tpu.pipeline_mode<synchronous>, transform_indices = @transform_2, window_bounds = array<i64: 4, 1>}, {transform_indices = @transform_3, window_bounds = array<i64: 1, 4, 64>}]} {
    %cst = arith.constant 0.000000e+00 : f32
    %0 = vector.broadcast %cst : f32 to vector<4x64xf32>
    %c0 = arith.constant 0 : index
    %c0_0 = arith.constant 0 : index
    %c0_1 = arith.constant 0 : index
    %c0_2 = arith.constant 0 : index
    %c0_3 = arith.constant 0 : index
    %1 = vector.load %arg2[%c0, %c0_0, %c0_1, %c0_2, %c0_3] : memref<1x1x2x12x72xbf16, #tpu.memory_space<vmem>>, vector<1x1x1x12x64xbf16>
    %2 = vector.shape_cast %1 : vector<1x1x1x12x64xbf16> to vector<12x64xbf16>
    %c0_4 = arith.constant 0 : index
    %c0_5 = arith.constant 0 : index
    %c0_6 = arith.constant 0 : index
    %3 = vector.load %arg3[%c0_4, %c0_5, %c0_6] : memref<3x4x12xbf16, #tpu.memory_space<vmem>>, vector<1x4x12xbf16>
    %4 = vector.shape_cast %3 : vector<1x4x12xbf16> to vector<4x12xbf16>
    %cst_7 = arith.constant dense<0.000000e+00> : vector<4x64xf32>
    %5 = tpu.matmul %4, %2, %cst_7 {dimension_numbers = #tpu.dot_dimension_numbers<[1], [0], [0], [1], [0, 0, 1, 1], [], []>} : vector<4x12xbf16>, vector<12x64xbf16>, vector<4x64xf32> -> vector<4x64xf32>
    %6 = arith.addf %0, %5 : vector<4x64xf32>
    %c0_8 = arith.constant 0 : index
    %c0_9 = arith.constant 0 : index
    %c1 = arith.constant 1 : index
    %c0_10 = arith.constant 0 : index
    %c0_11 = arith.constant 0 : index
    %7 = vector.load %arg2[%c0_8, %c0_9, %c1, %c0_10, %c0_11] : memref<1x1x2x12x72xbf16, #tpu.memory_space<vmem>>, vector<1x1x1x12x64xbf16>
    %8 = vector.shape_cast %7 : vector<1x1x1x12x64xbf16> to vector<12x64xbf16>
    %c1_12 = arith.constant 1 : index
    %c0_13 = arith.constant 0 : index
    %c0_14 = arith.constant 0 : index
    %9 = vector.load %arg3[%c1_12, %c0_13, %c0_14] : memref<3x4x12xbf16, #tpu.memory_space<vmem>>, vector<1x4x12xbf16>
    %10 = vector.shape_cast %9 : vector<1x4x12xbf16> to vector<4x12xbf16>
    %cst_15 = arith.constant dense<0.000000e+00> : vector<4x64xf32>
    %11 = tpu.matmul %10, %8, %cst_15 {dimension_numbers = #tpu.dot_dimension_numbers<[1], [0], [0], [1], [0, 0, 1, 1], [], []>} : vector<4x12xbf16>, vector<12x64xbf16>, vector<4x64xf32> -> vector<4x64xf32>
    %12 = arith.addf %6, %11 : vector<4x64xf32>
    %c0_16 = arith.constant 0 : index
    %c0_17 = arith.constant 0 : index
    %c0_18 = arith.constant 0 : index
    %c0_19 = arith.constant 0 : index
    %c8 = arith.constant 8 : index
    %13 = vector.load %arg2[%c0_16, %c0_17, %c0_18, %c0_19, %c8] : memref<1x1x2x12x72xbf16, #tpu.memory_space<vmem>>, vector<1x1x1x12x64xbf16>
    %14 = vector.shape_cast %13 : vector<1x1x1x12x64xbf16> to vector<12x64xbf16>
    %c2 = arith.constant 2 : index
    %c0_20 = arith.constant 0 : index
    %c0_21 = arith.constant 0 : index
    %15 = vector.load %arg3[%c2, %c0_20, %c0_21] : memref<3x4x12xbf16, #tpu.memory_space<vmem>>, vector<1x4x12xbf16>
    %16 = vector.shape_cast %15 : vector<1x4x12xbf16> to vector<4x12xbf16>
    %cst_22 = arith.constant dense<0.000000e+00> : vector<4x64xf32>
    %17 = tpu.matmul %16, %14, %cst_22 {dimension_numbers = #tpu.dot_dimension_numbers<[1], [0], [0], [1], [0, 0, 1, 1], [], []>} : vector<4x12xbf16>, vector<12x64xbf16>, vector<4x64xf32> -> vector<4x64xf32>
    %18 = arith.addf %12, %17 : vector<4x64xf32>
    %c0_23 = arith.constant 0 : index
    %c0_24 = arith.constant 0 : index
    %19 = vector.load %arg4[%c0_23, %c0_24] : memref<4x1xf32, #tpu.memory_space<vmem>>, vector<4x1xf32>
    %20 = vector.broadcast %19 : vector<4x1xf32> to vector<4x64xf32>
    %21 = arith.addf %18, %20 : vector<4x64xf32>
    %c0_25 = arith.constant 0 : index
    %c0_26 = arith.constant 0 : index
    %c0_27 = arith.constant 0 : index
    %22 = vector.load %arg5[%c0_25, %c0_26, %c0_27] : memref<1x4x64xf32, #tpu.memory_space<vmem>>, vector<1x4x64xf32>
    %23 = vector.shape_cast %22 : vector<1x4x64xf32> to vector<4x64xf32>
    %24 = vector.shape_cast %21 : vector<4x64xf32> to vector<1x4x64xf32>
    tpu.vector_store %arg5[%c0_25, %c0_26, %c0_27], %24 {strides = array<i32>} : memref<1x4x64xf32, #tpu.memory_space<vmem>>, vector<1x4x64xf32>,
    return
  }
  func.func @transform_0(%arg0: i32, %arg1: i32) -> (i32, i32, i32, i32, i32) {
    %c0_i32 = arith.constant 0 : i32
    %c0_i32_0 = arith.constant 0 : i32
    %c0_i32_1 = arith.constant 0 : i32
    %c0_i32_2 = arith.constant 0 : i32
    return %arg0, %arg1, %c0_i32, %c0_i32_0, %c0_i32_1 : i32, i32, i32, i32, i32
  }
  func.func @transform_1(%arg0: i32, %arg1: i32) -> (i32, i32, i32) {
    %c0_i32 = arith.constant 0 : i32
    %c0_i32_0 = arith.constant 0 : i32
    %c0_i32_1 = arith.constant 0 : i32
    %c0_i32_2 = arith.constant 0 : i32
    return %c0_i32, %c0_i32_0, %c0_i32_1 : i32, i32, i32
  }
  func.func @transform_2(%arg0: i32, %arg1: i32) -> (i32, i32) {
    %c0_i32 = arith.constant 0 : i32
    %c0_i32_0 = arith.constant 0 : i32
    %c0_i32_1 = arith.constant 0 : i32
    return %c0_i32, %c0_i32_0 : i32, i32
  }
  func.func @transform_3(%arg0: i32, %arg1: i32) -> (i32, i32, i32) {
    %c0_i32 = arith.constant 0 : i32
    %c0_i32_0 = arith.constant 0 : i32
    return %arg0, %c0_i32, %arg1 : i32, i32, i32
  }
}

</mosaic_0001>

<llo_original>
// kernel: downsample_forward.1
$region0: #{downsample_forward.1}
  #allocation0 [shape = 'u32[]', space=smem, size = 0x4, offset = 0x4, fixed_abs, tag = 'smem constant byte address 0x4 - core index']
  #allocation1 [shape = 'u32[144,128]{1,0:T(1,128)}', space=vmem, size = 0x12000, scoped, tag = 'internal scratch']
  %s0 = inlined_call_operand.vmem [shape: bf16[2,1,2,12,72], index: 0, kind: input, shape index: {}]
  %s1 = inlined_call_operand.vmem [shape: bf16[3,4,12], index: 1, kind: input, shape index: {}]
  %s2 = inlined_call_operand.vmem [shape: f32[4,1], index: 2, kind: input, shape index: {}]
  %s3 = inlined_call_operand.vmem [shape: f32[2,4,64], index: 3, kind: output, shape index: {}]
  %s4 = sld [smem:[#allocation0]]
  $region45: #{downsample_forward.1} parent=0
    _
  %s6 = ssub.s32 1, %s4
  %s7 = scalar_select 0, %s6, %s4
  loop: start=0, step=1, limit=4
  $region2: #{downsample_forward.1} parent=0 // loop_pre_header
    _
  $region3: #{downsample_forward.1} parent=0 // loop_header
    %s9 = sphi 0, %s13
    %p10 = scmp.ge.s32.totalorder %s9, 4
    %s16 = sphi 0, %s28
    %s17 = sphi 0, %s24
    %s18 = sphi 0, %s16
    %s19 = sphi 0, %s17
    %s20 = sphi 0, %s18
    %s21 = sphi 0, %s19
    %s33 = sphi 0, %s35
    %s36 = sphi 0, %s33
    %s37 = sphi 0, %s36
    %s53 = sphi 0, %s37
    %s57 = sphi 0, %s57
    %s59 = sphi 0, %s57
    %s60 = sphi 0, %s59
    %s74 = sphi 0, %s60
    %s78 = sphi 0, %s78
    %s80 = sphi 0, %s78
    %s81 = sphi 0, %s80
    %s95 = sphi 0, %s81
    %s103 = sphi 0, %s105
    %s106 = sphi 0, %s103
    %s107 = sphi 0, %s106
    %s123 = sphi 0, %s107
  $region4: #{downsample_forward.1} parent=0 // loop_header_branch
    %12 = sbr.rel (%p10) target = $region8
  $region5: #{downsample_forward.1} parent=0 // loop_body
    %s14 = ssub.s32 %s9, 1
    %s15 = ssub.s32 %s9, 2
    %s22 = sadd.s32 1, %s17
    %p23 = scmp.ge.s32.totalorder %s22, 1
    %s24 = scalar_select %p23, 0, %s22
    %s25 = sadd.s32 1, %s16
    %s26 = scalar_select %p23, %s25, %s16
    %p27 = scmp.ge.s32.totalorder %s26, 2
    %s28 = scalar_select %p27, 0, %s26
    %s29 = ssub.s32 %s16, %s28
    %s30 = ssub.s32 %s17, %s24
    %s31 = sor.u32 %s29, %s30
    %p32 = scmp.eq.s32.totalorder %s31, 0
    %s34 = sadd.s32 %s33, 1
    %s35 = scalar_select %p32, %s33, %s34
    %p38 = pneg %p32
    %p39 = scmp.eq.s32.totalorder %s9, 1
    %p40 = por %p38, %p39
    %p41 = scmp.ne.s32.totalorder %s33, %s36
    %p42 = scmp.eq.s32.totalorder %s9, 0
    %p43 = por %p41, %p42
    %p44 = scmp.ne.s32.totalorder %s33, %s36
    %p45 = scmp.eq.s32.totalorder %s14, 1
    %p46 = por %p44, %p45
    %p47 = scmp.ne.s32.totalorder %s36, %s37
    %p48 = scmp.eq.s32.totalorder %s14, 0
    %p49 = por %p47, %p48
    %p50 = scmp.ne.s32.totalorder %s36, %s37
    %p51 = scmp.eq.s32.totalorder %s15, 1
    %p52 = por %p50, %p51
    %p54 = scmp.ne.s32.totalorder %s37, %s53
    %p55 = scmp.eq.s32.totalorder %s15, 0
    %p56 = por %p54, %p55
    %s58 = sadd.s32 %s57, 1
    %p61 = scmp.eq.s32.totalorder %s9, 1
    %p62 = scmp.ne.s32.totalorder %s57, %s59
    %p63 = scmp.eq.s32.totalorder %s9, 0
    %p64 = por %p62, %p63
    %p65 = scmp.ne.s32.totalorder %s57, %s59
    %p66 = scmp.eq.s32.totalorder %s14, 1
    %p67 = por %p65, %p66
    %p68 = scmp.ne.s32.totalorder %s59, %s60
    %p69 = scmp.eq.s32.totalorder %s14, 0
    %p70 = por %p68, %p69
    %p71 = scmp.ne.s32.totalorder %s59, %s60
    %p72 = scmp.eq.s32.totalorder %s15, 1
    %p73 = por %p71, %p72
    %p75 = scmp.ne.s32.totalorder %s60, %s74
    %p76 = scmp.eq.s32.totalorder %s15, 0
    %p77 = por %p75, %p76
    %s79 = sadd.s32 %s78, 1
    %p82 = scmp.eq.s32.totalorder %s9, 1
    %p83 = scmp.ne.s32.totalorder %s78, %s80
    %p84 = scmp.eq.s32.totalorder %s9, 0
    %p85 = por %p83, %p84
    %p86 = scmp.ne.s32.totalorder %s78, %s80
    %p87 = scmp.eq.s32.totalorder %s14, 1
    %p88 = por %p86, %p87
    %p89 = scmp.ne.s32.totalorder %s80, %s81
    %p90 = scmp.eq.s32.totalorder %s14, 0
    %p91 = por %p89, %p90
    %p92 = scmp.ne.s32.totalorder %s80, %s81
    %p93 = scmp.eq.s32.totalorder %s15, 1
    %p94 = por %p92, %p93
    %p96 = scmp.ne.s32.totalorder %s81, %s95
    %p97 = scmp.eq.s32.totalorder %s15, 0
    %p98 = por %p96, %p97
    %s99 = ssub.s32 %s16, %s28
    %s100 = ssub.s32 %s17, %s24
    %s101 = sor.u32 %s99, %s100
    %p102 = scmp.eq.s32.totalorder %s101, 0
    %s104 = sadd.s32 %s103, 1
    %s105 = scalar_select %p102, %s103, %s104
    %p108 = pneg %p102
    %p109 = scmp.eq.s32.totalorder %s9, 1
    %p110 = por %p108, %p109
    %p111 = scmp.ne.s32.totalorder %s103, %s106
    %p112 = scmp.eq.s32.totalorder %s9, 0
    %p113 = por %p111, %p112
    %p114 = scmp.ne.s32.totalorder %s103, %s106
    %p115 = scmp.eq.s32.totalorder %s14, 1
    %p116 = por %p114, %p115
    %p117 = scmp.ne.s32.totalorder %s106, %s107
    %p118 = scmp.eq.s32.totalorder %s14, 0
    %p119 = por %p117, %p118
    %p120 = scmp.ne.s32.totalorder %s106, %s107
    %p121 = scmp.eq.s32.totalorder %s15, 1
    %p122 = por %p120, %p121
    %p124 = scmp.ne.s32.totalorder %s107, %s123
    %p125 = scmp.eq.s32.totalorder %s15, 0
    %p126 = por %p124, %p125
    %p127 = scmp.le.s32.totalorder 1, %s9
    %p128 = scmp.lt.s32.totalorder %s9, 3
    %p129 = pnand %p127, %p128
    %p130 = pneg %p129
    // Predicated region
    $region9: #{downsample_forward.1} parent=5 // pred_check
      _
    $region10: #{downsample_forward.1} parent=5 // pred_check_branch
      %132 = sbr.rel (%p129) target = $region12
    $region11: #{downsample_forward.1} parent=5 // pred_region
      %s133 = ssub.s32 %s9, 1
      // Predicated region
      $region13: #{downsample_forward.1} parent=11 // pred_check
        %p134 = pneg %p70
      $region14: #{downsample_forward.1} parent=11 // pred_check_branch
        %136 = sbr.rel (%p134) target = $region16
      $region15: #{downsample_forward.1} parent=11 // pred_region
        _
      $region16: #{downsample_forward.1} parent=11 // pred_fallthru
        _
      // Predicated region
      $region17: #{downsample_forward.1} parent=11 // pred_check
        %p137 = pneg %p91
      $region18: #{downsample_forward.1} parent=11 // pred_check_branch
        %139 = sbr.rel (%p137) target = $region20
      $region19: #{downsample_forward.1} parent=11 // pred_region
        _
      $region20: #{downsample_forward.1} parent=11 // pred_fallthru
        _
    $region12: #{downsample_forward.1} parent=5 // pred_fallthru
      _
    %p140 = scmp.lt.s32.totalorder %s9, 2
    // Predicated region
    $region21: #{downsample_forward.1} parent=5 // pred_check
      %p141 = pneg %p140
    $region22: #{downsample_forward.1} parent=5 // pred_check_branch
      %143 = sbr.rel (%p141) target = $region24
    $region23: #{downsample_forward.1} parent=5 // pred_region
      // Predicated region
      $region25: #{downsample_forward.1} parent=23 // pred_check
        %p144 = pneg %p43
      $region26: #{downsample_forward.1} parent=23 // pred_check_branch
        %146 = sbr.rel (%p144) target = $region28
      $region27: #{downsample_forward.1} parent=23 // pred_region
        %p147 = scmp.lt.s32.totalorder %s16, 1
        %s148 = scalar_select %p147, %s16, 1
        %p149 = scmp.lt.s32.totalorder %s17, 0
        %s150 = scalar_select %p149, %s17, 0
        %s151 = smul.addr %s150, 4
        %s152 = smul.addr %s148, 4
        %s153 = sadd.s32 %s151, %s152
        %s154 = smul.addr %s153, 4
        %s155 = scalar_lea.vmem %s0, %s154
      $region28: #{downsample_forward.1} parent=23 // pred_fallthru
        _
    $region24: #{downsample_forward.1} parent=5 // pred_fallthru
      _
    %p156 = scmp.le.s32.totalorder 1, %s9
    %p157 = scmp.lt.s32.totalorder %s9, 3
    %p158 = pnand %p156, %p157
    %p159 = pneg %p158
    // Predicated region
    $region29: #{downsample_forward.1} parent=5 // pred_check
      _
    $region30: #{downsample_forward.1} parent=5 // pred_check_branch
      %161 = sbr.rel (%p158) target = $region32
    $region31: #{downsample_forward.1} parent=5 // pred_region
      %s162 = ssub.s32 %s9, 1
      %p163 = scmp.lt.s32.totalorder %s18, 1
      %s164 = scalar_select %p163, %s18, 1
      %p165 = scmp.lt.s32.totalorder %s19, 0
      %s166 = scalar_select %p165, %s19, 0
      %s167 = smul.addr %s166, 4
      %s168 = smul.addr %s164, 4
      %s169 = sadd.s32 %s167, %s168
      %s170 = smul.addr %s169, 4
      %s171 = scalar_lea.vmem %s0, %s170
      %p172 = pneg %p49
      %p173 = pneg %p46
      %p174 = pneg %p70
      %p175 = pneg %p67
      %p176 = pneg %p91
      %p177 = pneg %p88
      %p178 = pneg %p119
      %p179 = pneg %p116
      %p180 = scmp.lt.s32.totalorder %s18, 1
      %s181 = scalar_select %p180, %s18, 1
      %p182 = scmp.lt.s32.totalorder %s19, 0
      %s183 = scalar_select %p182, %s19, 0
      %s184 = sadd.s32 %s183, %s181
      %s185 = smul.addr %s184, 4
      %s186 = scalar_lea.vmem %s3, %s185
      %p187 = scmp.lt.s32.totalorder %s18, 1
      %s188 = scalar_select %p187, %s18, 1
      %p189 = scmp.lt.s32.totalorder %s19, 0
      %s190 = scalar_select %p189, %s19, 0
      %s191 = smul.addr %s190, 4
      %s192 = smul.addr %s188, 4
      %s193 = sadd.s32 %s191, %s192
      %s194 = smul.addr %s193, 4
      %s195 = scalar_lea.vmem %s0, %s194
      %p196 = scmp.lt.s32.totalorder %s18, 1
      %s197 = scalar_select %p196, %s18, 1
      %p198 = scmp.lt.s32.totalorder %s19, 0
      %s199 = scalar_select %p198, %s19, 0
      %s200 = sadd.s32 %s199, %s197
      %s201 = smul.addr %s200, 4
      %s202 = scalar_lea.vmem %s3, %s201
      %v204 = vld [vmem:[%s195] sm:$0xf]
      %v205 = vld [vmem:[%s195 + $0x4] sm:$0x3]
      %v206 = vld [vmem:[%s1] sm:$0x3]
      %s207 = scalar_lea.vmem %s195, 8
      %v208 = vld [vmem:[%s207] sm:$0xf]
      %v209 = vld [vmem:[%s207 + $0x4] sm:$0x3]
      %s210 = scalar_lea.vmem %s1, 2
      %v211 = vld [vmem:[%s210] sm:$0x3]
      %v214 = vunpack.c.l.b16 %v208
      %v215 = vunpack.c.l.b16 %v209
      %v216 = vpack.c.b16 %v215, %v214
      %vm217 = vcmask 97280
      %v219 = vsel %vm217, %v211, 0
      %vm221 = vcmask 1045504
      %v223 = vsel %vm221, %v216, 0
      %225 = vmatprep.subr.bf16.mxu0 0
      %226 = vmatpush1.bf16.msra.mxu0 %v223
      %227 = vmatprep.subr.bf16.mxu0 0
      %228 = vmatpush1.bf16.msra.mxu0 0
      %229 = vmatprep.subr.bf16.mxu0 0
      %230 = vmatpush1.bf16.msra.mxu0 0
      %231 = vmatprep.subr.bf16.mxu0 0
      %232 = vmatpush1.bf16.msra.mxu0 0
      %233 = vmatprep.subr.bf16.mxu0 0
      %234 = vmatpush1.bf16.msra.mxu0 0
      %235 = vmatprep.subr.bf16.mxu0 0
      %236 = vmatpush1.bf16.msra.mxu0 0
      %237 = vmatprep.subr.bf16.mxu0 0
      %238 = vmatpush1.bf16.msra.mxu0 0
      %239 = vmatprep.subr.bf16.mxu0 0
      %240 = vmatpush1.bf16.msra.mxu0 0
      %241 = vmatprep.subr.bf16.mxu0 0
      %242 = vmatpush1.bf16.msra.mxu0 0
      %243 = vmatprep.subr.bf16.mxu0 0
      %244 = vmatpush1.bf16.msra.mxu0 0
      %245 = vmatprep.subr.bf16.mxu0 0
      %246 = vmatpush1.bf16.msra.mxu0 0
      %247 = vmatprep.subr.bf16.mxu0 0
      %248 = vmatpush1.bf16.msra.mxu0 0
      %249 = vmatprep.subr.bf16.mxu0 0
      %250 = vmatpush1.bf16.msra.mxu0 0
      %251 = vmatprep.subr.bf16.mxu0 0
      %252 = vmatpush1.bf16.msra.mxu0 0
      %253 = vmatprep.subr.bf16.mxu0 0
      %254 = vmatpush1.bf16.msra.mxu0 0
      %255 = vmatprep.subr.bf16.mxu0 0
      %256 = vmatpush1.bf16.msra.mxu0 0
      %257 = vmatprep.mubr.bf16.mxu0 0
      %258 = vmatmul.mubr.bf16.gmra.mrb[0].mxu0 %v219
      %v259 = vpop.f32.mrb[0].mxu0
      %v260 = vadd.f32 0.0, %v259
      %v261 = vpop.f32.mrb[0].mxu0
      %v262 = vpop.f32.mrb[0].mxu0
      %v263 = vpop.f32.mrb[0].mxu0
      %264 = vdwg.mxu0
      %v267 = vunpack.c.l.b16 %v204
      %v268 = vunpack.c.l.b16 %v205
      %v269 = vpack.c.b16 %v268, %v267
      %v271 = vsel %vm217, %v206, 0
      %v274 = vsel %vm221, %v269, 0
      %276 = vmatprep.subr.bf16.mxu0 0
      %277 = vmatpush1.bf16.msra.mxu0 %v274
      %278 = vmatprep.subr.bf16.mxu0 0
      %279 = vmatpush1.bf16.msra.mxu0 0
      %280 = vmatprep.subr.bf16.mxu0 0
      %281 = vmatpush1.bf16.msra.mxu0 0
      %282 = vmatprep.subr.bf16.mxu0 0
      %283 = vmatpush1.bf16.msra.mxu0 0
      %284 = vmatprep.subr.bf16.mxu0 0
      %285 = vmatpush1.bf16.msra.mxu0 0
      %286 = vmatprep.subr.bf16.mxu0 0
      %287 = vmatpush1.bf16.msra.mxu0 0
      %288 = vmatprep.subr.bf16.mxu0 0
      %289 = vmatpush1.bf16.msra.mxu0 0
      %290 = vmatprep.subr.bf16.mxu0 0
      %291 = vmatpush1.bf16.msra.mxu0 0
      %292 = vmatprep.subr.bf16.mxu0 0
      %293 = vmatpush1.bf16.msra.mxu0 0
      %294 = vmatprep.subr.bf16.mxu0 0
      %295 = vmatpush1.bf16.msra.mxu0 0
      %296 = vmatprep.subr.bf16.mxu0 0
      %297 = vmatpush1.bf16.msra.mxu0 0
      %298 = vmatprep.subr.bf16.mxu0 0
      %299 = vmatpush1.bf16.msra.mxu0 0
      %300 = vmatprep.subr.bf16.mxu0 0
      %301 = vmatpush1.bf16.msra.mxu0 0
      %302 = vmatprep.subr.bf16.mxu0 0
      %303 = vmatpush1.bf16.msra.mxu0 0
      %304 = vmatprep.subr.bf16.mxu0 0
      %305 = vmatpush1.bf16.msra.mxu0 0
      %306 = vmatprep.subr.bf16.mxu0 0
      %307 = vmatpush1.bf16.msra.mxu0 0
      %308 = vmatprep.mubr.bf16.mxu0 0
      %309 = vmatmul.mubr.bf16.gmra.mrb[0].mxu0 %v271
      %v310 = vpop.f32.mrb[0].mxu0
      %v311 = vadd.f32 %v260, %v310
      %v312 = vpop.f32.mrb[0].mxu0
      %v313 = vpop.f32.mrb[0].mxu0
      %v314 = vpop.f32.mrb[0].mxu0
      %315 = vdwg.mxu0
      %s316 = scalar_lea.vmem %s1, 4
      %v317 = vld [vmem:[%s316] sm:$0x3]
      %318 = vrot.lane.b32.xlu0 %v269, 120
      %v319 = vpop.permute.xlu0 %318
      %v321 = vsel %vm217, %v317, 0
      %v324 = vsel %vm221, %v319, 0
      %326 = vmatprep.subr.bf16.mxu0 0
      %327 = vmatpush1.bf16.msra.mxu0 %v324
      %328 = vmatprep.subr.bf16.mxu0 0
      %329 = vmatpush1.bf16.msra.mxu0 0
      %330 = vmatprep.subr.bf16.mxu0 0
      %331 = vmatpush1.bf16.msra.mxu0 0
      %332 = vmatprep.subr.bf16.mxu0 0
      %333 = vmatpush1.bf16.msra.mxu0 0
      %334 = vmatprep.subr.bf16.mxu0 0
      %335 = vmatpush1.bf16.msra.mxu0 0
      %336 = vmatprep.subr.bf16.mxu0 0
      %337 = vmatpush1.bf16.msra.mxu0 0
      %338 = vmatprep.subr.bf16.mxu0 0
      %339 = vmatpush1.bf16.msra.mxu0 0
      %340 = vmatprep.subr.bf16.mxu0 0
      %341 = vmatpush1.bf16.msra.mxu0 0
      %342 = vmatprep.subr.bf16.mxu0 0
      %343 = vmatpush1.bf16.msra.mxu0 0
      %344 = vmatprep.subr.bf16.mxu0 0
      %345 = vmatpush1.bf16.msra.mxu0 0
      %346 = vmatprep.subr.bf16.mxu0 0
      %347 = vmatpush1.bf16.msra.mxu0 0
      %348 = vmatprep.subr.bf16.mxu0 0
      %349 = vmatpush1.bf16.msra.mxu0 0
      %350 = vmatprep.subr.bf16.mxu0 0
      %351 = vmatpush1.bf16.msra.mxu0 0
      %352 = vmatprep.subr.bf16.mxu0 0
      %353 = vmatpush1.bf16.msra.mxu0 0
      %354 = vmatprep.subr.bf16.mxu0 0
      %355 = vmatpush1.bf16.msra.mxu0 0
      %356 = vmatprep.subr.bf16.mxu0 0
      %357 = vmatpush1.bf16.msra.mxu0 0
      %358 = vmatprep.mubr.bf16.mxu0 0
      %359 = vmatmul.mubr.bf16.gmra.mrb[0].mxu0 %v321
      %v360 = vpop.f32.mrb[0].mxu0
      %v361 = vadd.f32 0.0, %v360
      %v362 = vpop.f32.mrb[0].mxu0
      %v363 = vpop.f32.mrb[0].mxu0
      %v364 = vpop.f32.mrb[0].mxu0
      %365 = vdwg.mxu0
      %v366 = vadd.f32 %v311, %v361
      %v367 = vld [vmem:[%s2] sm:$0xf]
      %369 = vset.pattern.permute.xlu0 0
      %370 = vperm.xlu0 %369, %v367
      %v371 = vpop.permute.xlu0 %370
      %v373 = vadd.f32 %v366, %v371
      %vm374 = vcmask 519168
      %375 = vst.msk [vmem:[%s202] sm:$0xf] %vm374, %v373
      %p376 = scmp.lt.s32.totalorder %s18, 1
      %s377 = scalar_select %p376, %s18, 1
      %p378 = scmp.lt.s32.totalorder %s19, 0
      %s379 = scalar_select %p378, %s19, 0
      %s380 = sadd.s32 %s379, %s377
      %s381 = smul.addr %s380, 4
      %s382 = scalar_lea.vmem %s3, %s381
      // Predicated region
      $region33: #{downsample_forward.1} parent=31 // pred_check
        %p383 = pneg %p116
      $region34: #{downsample_forward.1} parent=31 // pred_check_branch
        %385 = sbr.rel (%p383) target = $region36
      $region35: #{downsample_forward.1} parent=31 // pred_region
        _
      $region36: #{downsample_forward.1} parent=31 // pred_fallthru
        _
    $region32: #{downsample_forward.1} parent=5 // pred_fallthru
      _
    %p386 = scmp.le.s32.totalorder 2, %s9
    // Predicated region
    $region37: #{downsample_forward.1} parent=5 // pred_check
      %p387 = pneg %p386
    $region38: #{downsample_forward.1} parent=5 // pred_check_branch
      %389 = sbr.rel (%p387) target = $region40
    $region39: #{downsample_forward.1} parent=5 // pred_region
      %s390 = ssub.s32 %s9, 2
      // Predicated region
      $region41: #{downsample_forward.1} parent=39 // pred_check
        %p391 = pneg %p122
      $region42: #{downsample_forward.1} parent=39 // pred_check_branch
        %393 = sbr.rel (%p391) target = $region44
      $region43: #{downsample_forward.1} parent=39 // pred_region
        %p394 = scmp.lt.s32.totalorder %s20, 1
        %s395 = scalar_select %p394, %s20, 1
        %p396 = scmp.lt.s32.totalorder %s21, 0
        %s397 = scalar_select %p396, %s21, 0
        %s398 = sadd.s32 %s397, %s395
        %s399 = smul.addr %s398, 4
        %s400 = scalar_lea.vmem %s3, %s399
      $region44: #{downsample_forward.1} parent=39 // pred_fallthru
        _
    $region40: #{downsample_forward.1} parent=5 // pred_fallthru
      _
  $region6: #{downsample_forward.1} parent=0 // loop_footer
    %s13 = sadd.s32 1, %s9
  $region7: #{downsample_forward.1} parent=0 // loop_footer_branch
    %8 = sbr.rel target = $region3
  $region8: #{downsample_forward.1} parent=0 // loop_exit
    _

</llo_original>
